<compile_context>
chip_gen: v6e
topology: v6e:2x2x1
jax: 0.10.0
libtpu: 0.0.40
codegen_flags: <defaults>
</compile_context>

<pallas_src>
import functools

import jax
import jax.numpy as jnp
from jax.experimental import pallas as pl
from jax.experimental.pallas import tpu as pltpu

ALPHA = 0.25
GAMMA = 2.0

_LANES = 128
_SUBLANES = 8
# exp(-|_PAD_LOGIT|) underflows to 0.0 in f32 -> padded elements contribute exactly 0.
_PAD_LOGIT = -1e4


def _round_up(a, b):
    return ((a + b - 1) // b) * b


def _bce_focal_kernel(x_ref, t_ref, out_ref, *, alpha, gamma):
    x = x_ref[...].astype(jnp.float32)   # (tile_g, 8, 128)
    t = t_ref[...].astype(jnp.float32)

    # Numerically-stable BCE with logits (matches torch.nn.BCEWithLogitsLoss):
    #   bce = max(x, 0) - x*t + log1p(exp(-|x|))
    e = jnp.exp(-jnp.abs(x))
    bce = jnp.maximum(x, 0.0) - x * t + jnp.log1p(e)

    # sigmoid and (1 - sigmoid) from the same e (one divide, no second exp):
    #   x >= 0:  p = 1/(1+e),   1-p = e/(1+e)
    #   x <  0:  p = e/(1+e),   1-p = 1/(1+e)
    inv = 1.0 / (1.0 + e)
    pos = x >= 0.0
    p = jnp.where(pos, 1.0, e) * inv
    one_m_p = jnp.where(pos, e, 1.0) * inv

    if gamma == 2.0:
        # Explicit squares: avoids the exp(gamma*log(x)) pow path, exact at 0.
        w = t * (alpha * (one_m_p * one_m_p)) + (1.0 - t) * (p * p)
    else:
        w = t * (alpha * one_m_p ** gamma) + (1.0 - t) * p ** gamma

    focal = bce * w  # focal weight factored out of bce: single multiply

    # Fold (tile_g, 8, 128) -> (8, 128) with pure VPU vreg adds; the final
    # cross-lane/sublane reduction happens once, in the wrapper, on a tiny array.
    out_ref[...] = jnp.sum(focal, axis=0)


def bce_focal_loss(preds, targets, alpha=ALPHA, gamma=GAMMA, max_tile_rows=4096):
    assert preds.shape == targets.shape
    total = preds.size  # true element count for the mean

    # Keep native dtypes for the HBM->VMEM transfer; cast to f32 in-kernel.
    x = jnp.ravel(preds)
    t = jnp.ravel(targets)

    # Lane-dense layout: pad flattened length to a whole number of (8,128) tiles,
    # then balance the row-tile size across the grid so padding stays tiny.
    rows = _round_up(pl.cdiv(total, _LANES), _SUBLANES)
    num_blocks = pl.cdiv(rows, max_tile_rows)
    tile_rows = _round_up(pl.cdiv(rows, num_blocks), _SUBLANES)
    padded_rows = num_blocks * tile_rows

    pad = padded_rows * _LANES - total
    if pad:
        x = jnp.pad(x, (0, pad), constant_values=_PAD_LOGIT)
        t = jnp.pad(t, (0, pad), constant_values=0.0)

    groups = padded_rows // _SUBLANES
    tile_g = tile_rows // _SUBLANES
    x = x.reshape(groups, _SUBLANES, _LANES)
    t = t.reshape(groups, _SUBLANES, _LANES)

    kernel = functools.partial(_bce_focal_kernel, alpha=alpha, gamma=gamma)

    partials = pl.pallas_call(
        kernel,
        out_shape=jax.ShapeDtypeStruct((num_blocks, _SUBLANES, _LANES), jnp.float32),
        grid_spec=pltpu.PrefetchScalarGridSpec(
            num_scalar_prefetch=0,
            grid=(num_blocks,),
            in_specs=[
                pl.BlockSpec((tile_g, _SUBLANES, _LANES), lambda i: (i, 0, 0)),
                pl.BlockSpec((tile_g, _SUBLANES, _LANES), lambda i: (i, 0, 0)),
            ],
            # Per-block independent lane-dense partial sums (no carried accumulator).
            out_specs=pl.BlockSpec((None, _SUBLANES, _LANES), lambda i: (i, 0, 0)),
        ),
        compiler_params=pltpu.CompilerParams(
            dimension_semantics=("parallel",),          # lets v7x use both TCs
            vmem_limit_bytes=32 * 1024 * 1024,          # safe on v5e/v6e/v7x
        ),
    )(x, t)

    return jnp.sum(partials) / jnp.float32(total)


def bce_focal_loss_ref(preds, targets, alpha=ALPHA, gamma=GAMMA):
    x = preds.astype(jnp.float32)
    t = targets.astype(jnp.float32)
    bce = jnp.maximum(x, 0.0) - x * t + jnp.log1p(jnp.exp(-jnp.abs(x)))
    p = jax.nn.sigmoid(x)
    loss = t * alpha * (1.0 - p) ** gamma * bce + (1.0 - t) * p ** gamma * bce
    return jnp.mean(loss)


if __name__ == "__main__":
    key = jax.random.PRNGKey(0)
    k1, k2 = jax.random.split(key)
    # Multi-label logits; C deliberately not a multiple of 128 to exercise the
    # flatten + pad path.
    N, C = 32, 100
    preds = jax.random.normal(k1, (N, C), dtype=jnp.float32)
    targets = (jax.random.uniform(k2, (N, C)) > 0.5).astype(jnp.float32)

    loss = bce_focal_loss(preds, targets)
    loss = jax.block_until_ready(loss)

    ref = bce_focal_loss_ref(preds, targets)
    assert jnp.allclose(loss, ref, rtol=1e-5, atol=1e-6), (loss, ref)
    print("KERNEL_OK")
</pallas_src>

<mosaic_0001>
module attributes {stable_mosaic.version = 11 : i64} {
  func.func @_bce_focal_kernel(%arg0: i32, %arg1: memref<4x8x128xf32, #tpu.memory_space<vmem>>, %arg2: memref<4x8x128xf32, #tpu.memory_space<vmem>>, %arg3: memref<1x8x128xf32, #tpu.memory_space<vmem>>) attributes {dimension_semantics = [#tpu.dimension_semantics<parallel>], iteration_bounds = array<i64: 1>, scalar_prefetch = 0 : i64, scratch_operands = 0 : i64, tpu.core_type = #tpu.core_type<tc>, window_params = [{transform_indices = @transform_0, window_bounds = array<i64: 4, 8, 128>}, {transform_indices = @transform_1, window_bounds = array<i64: 4, 8, 128>}, {transform_indices = @transform_2, window_bounds = array<i64: 1, 8, 128>}]} {
    %c0 = arith.constant 0 : index
    %c0_0 = arith.constant 0 : index
    %c0_1 = arith.constant 0 : index
    %0 = vector.load %arg1[%c0, %c0_0, %c0_1] : memref<4x8x128xf32, #tpu.memory_space<vmem>>, vector<4x8x128xf32>
    %c0_2 = arith.constant 0 : index
    %c0_3 = arith.constant 0 : index
    %c0_4 = arith.constant 0 : index
    %1 = vector.load %arg2[%c0_2, %c0_3, %c0_4] : memref<4x8x128xf32, #tpu.memory_space<vmem>>, vector<4x8x128xf32>
    %2 = math.absf %0 : vector<4x8x128xf32>
    %cst = arith.constant 0.000000e+00 : f32
    %3 = vector.broadcast %cst : f32 to vector<4x8x128xf32>
    %4 = arith.subf %3, %2 : vector<4x8x128xf32>
    %5 = math.exp %4 : vector<4x8x128xf32>
    %cst_5 = arith.constant 0.000000e+00 : f32
    %6 = vector.broadcast %cst_5 : f32 to vector<4x8x128xf32>
    %7 = arith.maximumf %0, %6 : vector<4x8x128xf32>
    %8 = arith.mulf %0, %1 : vector<4x8x128xf32>
    %9 = arith.subf %7, %8 : vector<4x8x128xf32>
    %10 = math.log1p %5 : vector<4x8x128xf32>
    %11 = arith.addf %9, %10 : vector<4x8x128xf32>
    %cst_6 = arith.constant 1.000000e+00 : f32
    %12 = vector.broadcast %cst_6 : f32 to vector<4x8x128xf32>
    %13 = arith.addf %12, %5 : vector<4x8x128xf32>
    %cst_7 = arith.constant 1.000000e+00 : f32
    %14 = vector.broadcast %cst_7 : f32 to vector<4x8x128xf32>
    %15 = arith.divf %14, %13 : vector<4x8x128xf32>
    %cst_8 = arith.constant 0.000000e+00 : f32
    %16 = vector.broadcast %cst_8 : f32 to vector<4x8x128xf32>
    %17 = arith.cmpf oge, %0, %16 : vector<4x8x128xf32>
    %cst_9 = arith.constant 1.000000e+00 : f32
    %18 = vector.broadcast %cst_9 : f32 to vector<4x8x128xf32>
    %19 = arith.select %17, %18, %5 : vector<4x8x128xi1>, vector<4x8x128xf32>
    %20 = arith.mulf %19, %15 : vector<4x8x128xf32>
    %cst_10 = arith.constant 1.000000e+00 : f32
    %21 = vector.broadcast %cst_10 : f32 to vector<4x8x128xf32>
    %22 = arith.select %17, %5, %21 : vector<4x8x128xi1>, vector<4x8x128xf32>
    %23 = arith.mulf %22, %15 : vector<4x8x128xf32>
    %24 = arith.mulf %23, %23 : vector<4x8x128xf32>
    %cst_11 = arith.constant 2.500000e-01 : f32
    %25 = vector.broadcast %cst_11 : f32 to vector<4x8x128xf32>
    %26 = arith.mulf %25, %24 : vector<4x8x128xf32>
    %27 = arith.mulf %1, %26 : vector<4x8x128xf32>
    %cst_12 = arith.constant 1.000000e+00 : f32
    %28 = vector.broadcast %cst_12 : f32 to vector<4x8x128xf32>
    %29 = arith.subf %28, %1 : vector<4x8x128xf32>
    %30 = arith.mulf %20, %20 : vector<4x8x128xf32>
    %31 = arith.mulf %29, %30 : vector<4x8x128xf32>
    %32 = arith.addf %27, %31 : vector<4x8x128xf32>
    %33 = arith.mulf %11, %32 : vector<4x8x128xf32>
    %cst_13 = arith.constant dense<0.000000e+00> : vector<8x128xf32>
    %34 = vector.multi_reduction <add>, %33, %cst_13 [0] : vector<4x8x128xf32> to vector<8x128xf32>
    %c0_14 = arith.constant 0 : index
    %c0_15 = arith.constant 0 : index
    %c0_16 = arith.constant 0 : index
    %35 = vector.load %arg3[%c0_14, %c0_15, %c0_16] : memref<1x8x128xf32, #tpu.memory_space<vmem>>, vector<1x8x128xf32>
    %36 = vector.shape_cast %35 : vector<1x8x128xf32> to vector<8x128xf32>
    %37 = vector.shape_cast %34 : vector<8x128xf32> to vector<1x8x128xf32>
    tpu.vector_store %arg3[%c0_14, %c0_15, %c0_16], %37 {strides = array<i32>} : memref<1x8x128xf32, #tpu.memory_space<vmem>>, vector<1x8x128xf32>,
    return
  }
  func.func @transform_0(%arg0: i32) -> (i32, i32, i32) {
    %c0_i32 = arith.constant 0 : i32
    %c0_i32_0 = arith.constant 0 : i32
    %c0_i32_1 = arith.constant 0 : i32
    return %arg0, %c0_i32, %c0_i32_0 : i32, i32, i32
  }
  func.func @transform_1(%arg0: i32) -> (i32, i32, i32) {
    %c0_i32 = arith.constant 0 : i32
    %c0_i32_0 = arith.constant 0 : i32
    %c0_i32_1 = arith.constant 0 : i32
    return %arg0, %c0_i32, %c0_i32_0 : i32, i32, i32
  }
  func.func @transform_2(%arg0: i32) -> (i32, i32, i32) {
    %c0_i32 = arith.constant 0 : i32
    %c0_i32_0 = arith.constant 0 : i32
    %c0_i32_1 = arith.constant 0 : i32
    return %arg0, %c0_i32, %c0_i32_0 : i32, i32, i32
  }
}

</mosaic_0001>

<llo_original>
// kernel: tpu_custom_call.1
$region0: #{tpu_custom_call.1}
  #allocation0 [shape = 'u32[]', space=smem, size = 0x4, offset = 0x4, fixed_abs, tag = 'smem constant byte address 0x4 - core index']
  #allocation1 [shape = 'u32[144,128]{1,0:T(1,128)}', space=vmem, size = 0x12000, scoped, tag = 'internal scratch']
  %s0 = inlined_call_operand.hbm [shape: f32[4,8,128], index: 0, kind: input, shape index: {}]
  %s1 = inlined_call_operand.hbm [shape: f32[4,8,128], index: 1, kind: input, shape index: {}]
  %s2 = inlined_call_operand.hbm [shape: f32[1,8,128], index: 2, kind: output, shape index: {}]
  %s3 = sld [smem:[#allocation0]]
  $region26: #{tpu_custom_call.1} parent=0
    _
  %s5 = ssub.s32 1, %s3
  %s6 = scalar_select 0, %s5, %s3
  $region1: #{tpu_custom_call.1} parent=0
    #allocation2 [shape = 'u8[16384]{0}', space=vmem, size = 0x4000, scoped, tag = 'input window, operand 0, single buffered']
    #allocation3 [shape = 's32[1]{0}', space=sflag, size = 0x4, scoped, tag = 'scoped memory for tpu_custom_call.1']
    #allocation4 [shape = 's32[1]{0}', space=sflag, size = 0x4, scoped, tag = 'scoped memory for tpu_custom_call.1']
    #allocation5 [shape = 'u8[16384]{0}', space=vmem, size = 0x4000, scoped, tag = 'input window, operand 1, single buffered']
    #allocation6 [shape = 's32[1]{0}', space=sflag, size = 0x4, scoped, tag = 'scoped memory for tpu_custom_call.1']
    #allocation7 [shape = 'u8[4096]{0}', space=vmem, size = 0x1000, scoped, tag = 'output window, operand 0, single buffered']
    %7 = vsyncpa [#allocation3], 0
    %8 = vsyncpa [#allocation6], 0
    %9 = vsyncpa [#allocation4], 0
    // Predicated region
    $region2: #{tpu_custom_call.1} parent=1 // pred_check
      _
    $region3: #{tpu_custom_call.1} parent=1 // pred_check_branch
      %11 = sbr.rel (0) target = $region5
    $region4: #{tpu_custom_call.1} parent=1 // pred_region
      %s13 = ssub.s32 512, 512
      %14 = vsyncadd [#allocation3], %s13
      %s15 = sshll.u32 [#allocation2], 4
      %s16 = int_to_ptr.vmem [resolvable:$true] %s15
      %21 = dma.hbm_to_vmem [thread:$0]  %s0, 512, %s16, [#allocation3], 128, 128, 8
    $region5: #{tpu_custom_call.1} parent=1 // pred_fallthru
      _
    // Predicated region
    $region6: #{tpu_custom_call.1} parent=1 // pred_check
      _
    $region7: #{tpu_custom_call.1} parent=1 // pred_check_branch
      %23 = sbr.rel (0) target = $region9
    $region8: #{tpu_custom_call.1} parent=1 // pred_region
      %s25 = ssub.s32 512, 512
      %26 = vsyncadd [#allocation6], %s25
      %s27 = sshll.u32 [#allocation5], 4
      %s28 = int_to_ptr.vmem [resolvable:$true] %s27
      %33 = dma.hbm_to_vmem [thread:$0]  %s1, 512, %s28, [#allocation6], 128, 128, 8
    $region9: #{tpu_custom_call.1} parent=1 // pred_fallthru
      _
    // Predicated region
    $region10: #{tpu_custom_call.1} parent=1 // pred_check
      _
    $region11: #{tpu_custom_call.1} parent=1 // pred_check_branch
      %35 = sbr.rel (0) target = $region13
    $region12: #{tpu_custom_call.1} parent=1 // pred_region
      %36 = dma.done [#allocation3], 512
    $region13: #{tpu_custom_call.1} parent=1 // pred_fallthru
      _
    // Predicated region
    $region14: #{tpu_custom_call.1} parent=1 // pred_check
      _
    $region15: #{tpu_custom_call.1} parent=1 // pred_check_branch
      %38 = sbr.rel (0) target = $region17
    $region16: #{tpu_custom_call.1} parent=1 // pred_region
      %39 = dma.done [#allocation6], 512
    $region17: #{tpu_custom_call.1} parent=1 // pred_fallthru
      _
    %v40 = vld [vmem:[#allocation2] sm:$0xff]
    %v41 = vld [vmem:[#allocation2 + $0x8] sm:$0xff]
    %v42 = vld [vmem:[#allocation2 + $0x10] sm:$0xff]
    %v43 = vld [vmem:[#allocation2 + $0x18] sm:$0xff]
    %v44 = vld [vmem:[#allocation5] sm:$0xff]
    %v45 = vld [vmem:[#allocation5 + $0x8] sm:$0xff]
    %v46 = vld [vmem:[#allocation5 + $0x10] sm:$0xff]
    %v47 = vld [vmem:[#allocation5 + $0x18] sm:$0xff]
    %v48 = vand.u32 2147483647, %v40
    %v49 = vand.u32 2147483647, %v41
    %v50 = vand.u32 2147483647, %v42
    %v51 = vand.u32 2147483647, %v43
    %v52 = vsub.f32 0.0, %v48
    %v53 = vsub.f32 0.0, %v49
    %v54 = vsub.f32 0.0, %v50
    %v55 = vsub.f32 0.0, %v51
    %v56 = vmul.f32 %v52, 1.442695
    %v57 = vpow.pop %v56
    %v58 = vmul.f32 %v53, 1.442695
    %v59 = vpow.pop %v58
    %v60 = vmul.f32 %v54, 1.442695
    %v61 = vpow.pop %v60
    %v62 = vmul.f32 %v55, 1.442695
    %v63 = vpow.pop %v62
    %v64 = vmax.f32 %v40, 0.0
    %v65 = vmax.f32 %v41, 0.0
    %v66 = vmax.f32 %v42, 0.0
    %v67 = vmax.f32 %v43, 0.0
    %v68 = vmul.f32 %v40, %v44
    %v69 = vmul.f32 %v41, %v45
    %v70 = vmul.f32 %v42, %v46
    %v71 = vmul.f32 %v43, %v47
    %v72 = vsub.f32 %v64, %v68
    %v73 = vsub.f32 %v65, %v69
    %v74 = vsub.f32 %v66, %v70
    %v75 = vsub.f32 %v67, %v71
    %v76 = vadd.f32 %v57, 1.0
    %v77 = vlog2.pop %v76
    %v78 = vmul.f32 %v77, 0.6931472
    %v79 = vmul.f32 -0.5, %v57
    %v80 = vadd.f32 %v79, 1.0
    %v81 = vmul.f32 %v80, %v57
    %v82 = vand.u32 2147483647, %v57
    %vm83 = vcmp.lt.f32.partialorder %v82, 0.0004427343
    %v84 = vsel %vm83, %v81, %v78
    %v85 = vadd.f32 %v59, 1.0
    %v86 = vlog2.pop %v85
    %v87 = vmul.f32 %v86, 0.6931472
    %v88 = vmul.f32 -0.5, %v59
    %v89 = vadd.f32 %v88, 1.0
    %v90 = vmul.f32 %v89, %v59
    %v91 = vand.u32 2147483647, %v59
    %vm92 = vcmp.lt.f32.partialorder %v91, 0.0004427343
    %v93 = vsel %vm92, %v90, %v87
    %v94 = vadd.f32 %v61, 1.0
    %v95 = vlog2.pop %v94
    %v96 = vmul.f32 %v95, 0.6931472
    %v97 = vmul.f32 -0.5, %v61
    %v98 = vadd.f32 %v97, 1.0
    %v99 = vmul.f32 %v98, %v61
    %v100 = vand.u32 2147483647, %v61
    %vm101 = vcmp.lt.f32.partialorder %v100, 0.0004427343
    %v102 = vsel %vm101, %v99, %v96
    %v103 = vadd.f32 %v63, 1.0
    %v104 = vlog2.pop %v103
    %v105 = vmul.f32 %v104, 0.6931472
    %v106 = vmul.f32 -0.5, %v63
    %v107 = vadd.f32 %v106, 1.0
    %v108 = vmul.f32 %v107, %v63
    %v109 = vand.u32 2147483647, %v63
    %vm110 = vcmp.lt.f32.partialorder %v109, 0.0004427343
    %v111 = vsel %vm110, %v108, %v105
    %v112 = vadd.f32 %v72, %v84
    %v113 = vadd.f32 %v73, %v93
    %v114 = vadd.f32 %v74, %v102
    %v115 = vadd.f32 %v75, %v111
    %v116 = vadd.f32 %v57, 1.0
    %v117 = vadd.f32 %v59, 1.0
    %v118 = vadd.f32 %v61, 1.0
    %v119 = vadd.f32 %v63, 1.0
    %v120 = vrcp.pop %v116
    %v121 = vmul.f32 1.0, %v120
    %v122 = vrcp.pop %v117
    %v123 = vmul.f32 1.0, %v122
    %v124 = vrcp.pop %v118
    %v125 = vmul.f32 1.0, %v124
    %v126 = vrcp.pop %v119
    %v127 = vmul.f32 1.0, %v126
    %vm128 = vcmp.ge.f32.partialorder %v40, 0.0
    %vm129 = vcmp.ge.f32.partialorder %v41, 0.0
    %vm130 = vcmp.ge.f32.partialorder %v42, 0.0
    %vm131 = vcmp.ge.f32.partialorder %v43, 0.0
    %v132 = vsel %vm128, 1.0, %v57
    %v133 = vsel %vm129, 1.0, %v59
    %v134 = vsel %vm130, 1.0, %v61
    %v135 = vsel %vm131, 1.0, %v63
    %v136 = vmul.f32 %v132, %v121
    %v137 = vmul.f32 %v133, %v123
    %v138 = vmul.f32 %v134, %v125
    %v139 = vmul.f32 %v135, %v127
    %v140 = vsel %vm128, %v57, 1.0
    %v141 = vsel %vm129, %v59, 1.0
    %v142 = vsel %vm130, %v61, 1.0
    %v143 = vsel %vm131, %v63, 1.0
    %v144 = vmul.f32 %v140, %v121
    %v145 = vmul.f32 %v141, %v123
    %v146 = vmul.f32 %v142, %v125
    %v147 = vmul.f32 %v143, %v127
    %v148 = vmul.f32 %v144, %v144
    %v149 = vmul.f32 %v145, %v145
    %v150 = vmul.f32 %v146, %v146
    %v151 = vmul.f32 %v147, %v147
    %v152 = vmul.f32 %v148, 0.25
    %v153 = vmul.f32 %v149, 0.25
    %v154 = vmul.f32 %v150, 0.25
    %v155 = vmul.f32 %v151, 0.25
    %v156 = vmul.f32 %v44, %v152
    %v157 = vmul.f32 %v45, %v153
    %v158 = vmul.f32 %v46, %v154
    %v159 = vmul.f32 %v47, %v155
    %v160 = vsub.f32 1.0, %v44
    %v161 = vsub.f32 1.0, %v45
    %v162 = vsub.f32 1.0, %v46
    %v163 = vsub.f32 1.0, %v47
    %v164 = vmul.f32 %v136, %v136
    %v165 = vmul.f32 %v137, %v137
    %v166 = vmul.f32 %v138, %v138
    %v167 = vmul.f32 %v139, %v139
    %v168 = vmul.f32 %v160, %v164
    %v169 = vmul.f32 %v161, %v165
    %v170 = vmul.f32 %v162, %v166
    %v171 = vmul.f32 %v163, %v167
    %v172 = vadd.f32 %v156, %v168
    %v173 = vadd.f32 %v157, %v169
    %v174 = vadd.f32 %v158, %v170
    %v175 = vadd.f32 %v159, %v171
    %v176 = vmul.f32 %v112, %v172
    %v177 = vmul.f32 %v113, %v173
    %v178 = vmul.f32 %v114, %v174
    %v179 = vmul.f32 %v115, %v175
    %v180 = vadd.f32 %v176, %v177
    %v181 = vadd.f32 %v180, %v178
    %v182 = vadd.f32 %v181, %v179
    %183 = vst [vmem:[#allocation7] sm:$0xff] %v182
    // Predicated region
    $region18: #{tpu_custom_call.1} parent=1 // pred_check
      _
    $region19: #{tpu_custom_call.1} parent=1 // pred_check_branch
      %185 = sbr.rel (0) target = $region21
    $region20: #{tpu_custom_call.1} parent=1 // pred_region
      %s187 = ssub.s32 128, 128
      %188 = vsyncadd [#allocation4], %s187
      %s190 = sshll.u32 [#allocation7], 4
      %s191 = int_to_ptr.vmem [resolvable:$true] %s190
      %193 = dma.vmem_to_hbm [thread:$0]  %s191, 128, %s2, [#allocation4]
    $region21: #{tpu_custom_call.1} parent=1 // pred_fallthru
      _
    // Predicated region
    $region22: #{tpu_custom_call.1} parent=1 // pred_check
      _
    $region23: #{tpu_custom_call.1} parent=1 // pred_check_branch
      %195 = sbr.rel (0) target = $region25
    $region24: #{tpu_custom_call.1} parent=1 // pred_region
      %196 = dma.done [#allocation4], 128
    $region25: #{tpu_custom_call.1} parent=1 // pred_fallthru
      _
    %197 = vsyncpa [#allocation3], 1
    %198 = vsyncpa [#allocation6], 1
    %199 = vsyncpa [#allocation4], 1

</llo_original>
